<compile_context>
chip_gen: v6e
topology: v6e:2x2x1
jax: 0.10.0
libtpu: 0.0.40
codegen_flags: <defaults>
</compile_context>

<pallas_src>
import functools

import jax
import jax.numpy as jnp
from jax import lax
from jax.experimental import pallas as pl
from jax.experimental.pallas import tpu as pltpu

EPS = 1e-5
SUBLANE = 8  # f32 sublane multiple


def _round_up(n, m):
    return ((n + m - 1) // m) * m


def _conv_fused(h, w_ref, keep_l, keep_r, nl):
    """h: (C_pad, NL); w_ref: Ref[(C_out_pad, 3*C_pad)]; keep_*: (1, NL) edge masks."""
    # column j of h_prev holds h[:, j-1] within the same sample (0 at sample start)
    h_prev = pltpu.roll(h, shift=1, axis=1) * keep_l
    # column j of h_next holds h[:, j+1] within the same sample (0 at sample end)
    # NOTE: pltpu.roll needs a non-negative shift; NL-1 == -1 (mod NL).
    h_next = pltpu.roll(h, shift=nl - 1, axis=1) * keep_r
    stacked = jnp.concatenate([h_prev, h, h_next], axis=0)          # (3*C_pad, NL)
    return jnp.dot(w_ref[...], stacked, preferred_element_type=jnp.float32)


def _bn_relu(h, gb, inv_count):
    """Training-mode BatchNorm1d (batch statistics) + ReLU, one-pass stats in f32.

    h: (C_pad, NL); gb: (C_pad, 2) holding [gamma | beta] (padded rows: gamma=1, beta=0,
    and padded rows of h are exactly zero, so they stay zero through BN+ReLU).
    """
    gamma = gb[:, 0:1]
    beta = gb[:, 1:2]
    mean = jnp.sum(h, axis=1, keepdims=True) * inv_count             # (C_pad, 1)
    ex2 = jnp.sum(h * h, axis=1, keepdims=True) * inv_count          # (C_pad, 1)
    var = ex2 - mean * mean                                          # biased variance
    scale = gamma / jnp.sqrt(var + EPS)
    return jnp.maximum((h - mean) * scale + beta, 0.0)


def double_conv_kernel(x_ref, km_ref, w1_ref, gb1_ref, w2_ref, gb2_ref, o_ref,
                       *, inv_count, nl):
    km = km_ref[...]
    keep_l = km[0:1, :]
    keep_r = km[1:2, :]
    # conv1 (bias folded away by training-mode BN) + BN + ReLU
    h = _conv_fused(x_ref[...], w1_ref, keep_l, keep_r, nl)
    h = _bn_relu(h, gb1_ref[...], inv_count)
    # conv2 + BN + ReLU
    h = _conv_fused(h, w2_ref, keep_l, keep_r, nl)
    h = _bn_relu(h, gb2_ref[...], inv_count)
    o_ref[...] = h


@jax.jit
def double_conv(x, w1, b1, g1, be1, w2, b2, g2, be2):
    """x: (N, C_in, L). Conv weights in PyTorch layout (C_out, C_in, 3); biases (C,).

    b1/b2 are accepted for API parity but NOT used inside the kernel: a per-channel
    constant bias is exactly cancelled by the training-mode BatchNorm mean subtraction
    that immediately follows each conv (would need to be applied in eval mode).
    """
    N, c_in, L = x.shape
    c_mid = w1.shape[0]
    c_out = w2.shape[0]
    NL = N * L

    c_in_p = _round_up(c_in, SUBLANE)
    c_mid_p = _round_up(c_mid, SUBLANE)
    c_out_p = _round_up(c_out, SUBLANE)

    # Lane-dense activation slab (C_in_p, N*L), sublane-padded with zero rows.
    # TODO(synk): at scale, keep activations in this layout across the network
    #             instead of paying the transpose round-trip here.
    x2d = jnp.transpose(x, (1, 0, 2)).reshape(c_in, NL).astype(jnp.float32)
    x2d = jnp.pad(x2d, ((0, c_in_p - c_in), (0, 0)))

    # Fused conv weights (C_out_p, 3*C_in_p), tap-major to match [h_prev; h; h_next],
    # with each tap block padded to the sublane multiple.
    def fuse_w(w, co, co_p, ci, ci_p):
        wp = jnp.pad(w.astype(jnp.float32), ((0, co_p - co), (0, ci_p - ci), (0, 0)))
        return jnp.transpose(wp, (0, 2, 1)).reshape(co_p, 3 * ci_p)

    w1f = fuse_w(w1, c_mid, c_mid_p, c_in, c_in_p)
    w2f = fuse_w(w2, c_out, c_out_p, c_mid, c_mid_p)

    # Sample-boundary masks for the +/-1 halo, computed once and merged into one slab.
    pos = jnp.arange(NL, dtype=jnp.int32) % L
    keep_l = (pos != 0).astype(jnp.float32)
    keep_r = (pos != (L - 1)).astype(jnp.float32)
    km = jnp.stack([keep_l, keep_r], axis=0)                         # (2, NL)

    # Per-layer [gamma | beta] slabs; padded channels get gamma=1, beta=0.
    def fuse_gb(g, be, c, c_p):
        gp = jnp.pad(g.astype(jnp.float32), (0, c_p - c), constant_values=1.0)
        bp = jnp.pad(be.astype(jnp.float32), (0, c_p - c))
        return jnp.stack([gp, bp], axis=1)                           # (c_p, 2)

    gb1 = fuse_gb(g1, be1, c_mid, c_mid_p)
    gb2 = fuse_gb(g2, be2, c_out, c_out_p)

    # Generation-aware VMEM budget: resident f32 activations + stacked operands +
    # temporaries, doubled for headroom, capped at 75% of this chip's VMEM.
    resident = 4 * NL * (4 * c_in_p + 5 * c_mid_p + 2 * c_out_p) + 4 * 3 * (
        c_mid_p * c_in_p + c_out_p * c_mid_p)
    try:
        cap = int(pltpu.get_tpu_info().vmem_capacity_bytes)
    except Exception:
        cap = 64 << 20  # conservative fallback (v7x per-TC VMEM)
    vmem_limit = int(min((3 * cap) // 4, max(16 << 20, 2 * resident)))

    vmem = pl.BlockSpec(memory_space=pltpu.MemorySpace.VMEM)
    kernel = functools.partial(double_conv_kernel, inv_count=1.0 / float(NL), nl=NL)

    out2d = pl.pallas_call(
        kernel,
        out_shape=jax.ShapeDtypeStruct((c_out_p, NL), jnp.float32),
        in_specs=[vmem] * 6,
        out_specs=vmem,
        compiler_params=pltpu.CompilerParams(vmem_limit_bytes=vmem_limit),
    )(x2d, km, w1f, gb1, w2f, gb2)

    return jnp.transpose(out2d[:c_out].reshape(c_out, N, L), (1, 0, 2))


def reference(x, w1, b1, g1, be1, w2, b2, g2, be2):
    """Pure-JAX reference matching nn.Sequential(Conv1d, BN1d, ReLU, Conv1d, BN1d, ReLU)
    in training mode (batch statistics). Conv weights in PyTorch layout (Co, Ci, 3)."""
    def conv(h, w, b):
        hp = jnp.pad(h, ((0, 0), (0, 0), (1, 1)))
        y = (jnp.einsum("oc,ncl->nol", w[:, :, 0], hp[:, :, :-2])
             + jnp.einsum("oc,ncl->nol", w[:, :, 1], hp[:, :, 1:-1])
             + jnp.einsum("oc,ncl->nol", w[:, :, 2], hp[:, :, 2:]))
        return y + b[None, :, None]

    def bn_relu(y, g, be):
        mean = jnp.mean(y, axis=(0, 2), keepdims=True)
        var = jnp.mean((y - mean) ** 2, axis=(0, 2), keepdims=True)
        return jnp.maximum(
            (y - mean) * (g[None, :, None] / jnp.sqrt(var + EPS)) + be[None, :, None],
            0.0,
        )

    h = bn_relu(conv(x, w1, b1), g1, be1)
    return bn_relu(conv(h, w2, b2), g2, be2)


if __name__ == "__main__":
    # Small shapes consistent with DoubleConv's forward: (batch, channels, length).
    N, C_IN, C_OUT, L = 2, 4, 8, 128
    C_MID = C_OUT  # mid_channels defaults to out_channels

    key = jax.random.PRNGKey(0)
    k1, k2, k3, k4, kx = jax.random.split(key, 5)

    # Conv weights in PyTorch nn.Conv1d layout (C_out, C_in, 3); biases nonzero so the
    # in-kernel bias-drop-under-BN simplification is exercised against the
    # bias-including reference.
    w1 = jax.random.normal(k1, (C_MID, C_IN, 3), jnp.float32) * 0.3
    b1 = jax.random.normal(k2, (C_MID,), jnp.float32) * 0.1
    w2 = jax.random.normal(k3, (C_OUT, C_MID, 3), jnp.float32) * 0.3
    b2 = jax.random.normal(k4, (C_OUT,), jnp.float32) * 0.1
    # BatchNorm affine params at PyTorch defaults: gamma=1, beta=0.
    g1 = jnp.ones((C_MID,), jnp.float32)
    be1 = jnp.zeros((C_MID,), jnp.float32)
    g2 = jnp.ones((C_OUT,), jnp.float32)
    be2 = jnp.zeros((C_OUT,), jnp.float32)

    x = jax.random.normal(kx, (N, C_IN, L), jnp.float32)

    out = double_conv(x, w1, b1, g1, be1, w2, b2, g2, be2)
    out = jax.block_until_ready(out)

    ref = reference(x, w1, b1, g1, be1, w2, b2, g2, be2)
    assert out.shape == (N, C_OUT, L)
    err = float(jnp.max(jnp.abs(out - ref)))
    assert jnp.allclose(out, ref, atol=1e-4, rtol=1e-4), err

    print("KERNEL_OK")
</pallas_src>

<mosaic_0001>
module attributes {stable_mosaic.version = 11 : i64} {
  func.func @double_conv_kernel(%arg0: memref<8x256xf32, #tpu.memory_space<vmem>>, %arg1: memref<2x256xf32, #tpu.memory_space<vmem>>, %arg2: memref<8x24xf32, #tpu.memory_space<vmem>>, %arg3: memref<8x2xf32, #tpu.memory_space<vmem>>, %arg4: memref<8x24xf32, #tpu.memory_space<vmem>>, %arg5: memref<8x2xf32, #tpu.memory_space<vmem>>, %arg6: memref<8x256xf32, #tpu.memory_space<vmem>>) attributes {dimension_semantics = [], scalar_prefetch = 0 : i64, scratch_operands = 0 : i64, tpu.core_type = #tpu.core_type<tc>} {
    %c0 = arith.constant 0 : index
    %c0_0 = arith.constant 0 : index
    %0 = vector.load %arg1[%c0, %c0_0] : memref<2x256xf32, #tpu.memory_space<vmem>>, vector<2x256xf32>
    %1 = vector.extract_strided_slice %0 {offsets = [0, 0], sizes = [1, 256], strides = [1, 1]} : vector<2x256xf32> to vector<1x256xf32>
    %2 = vector.extract_strided_slice %0 {offsets = [1, 0], sizes = [1, 256], strides = [1, 1]} : vector<2x256xf32> to vector<1x256xf32>
    %c0_1 = arith.constant 0 : index
    %c0_2 = arith.constant 0 : index
    %3 = vector.load %arg0[%c0_1, %c0_2] : memref<8x256xf32, #tpu.memory_space<vmem>>, vector<8x256xf32>
    %c1_i32 = arith.constant 1 : i32
    %4 = tpu.dynamic_rotate %3 by %c1_i32 dim 1 : vector<8x256xf32>, i32 -> vector<8x256xf32>
    %5 = vector.broadcast %1 : vector<1x256xf32> to vector<8x256xf32>
    %6 = arith.mulf %4, %5 : vector<8x256xf32>
    %c255_i32 = arith.constant 255 : i32
    %7 = tpu.dynamic_rotate %3 by %c255_i32 dim 1 : vector<8x256xf32>, i32 -> vector<8x256xf32>
    %8 = vector.broadcast %2 : vector<1x256xf32> to vector<8x256xf32>
    %9 = arith.mulf %7, %8 : vector<8x256xf32>
    %10 = tpu.concatenate %6, %3, %9 in 0 : vector<8x256xf32>, vector<8x256xf32>, vector<8x256xf32> -> vector<24x256xf32>
    %c0_3 = arith.constant 0 : index
    %c0_4 = arith.constant 0 : index
    %11 = vector.load %arg2[%c0_3, %c0_4] : memref<8x24xf32, #tpu.memory_space<vmem>>, vector<8x24xf32>
    %cst = arith.constant dense<0.000000e+00> : vector<8x256xf32>
    %12 = tpu.matmul %11, %10, %cst {dimension_numbers = #tpu.dot_dimension_numbers<[1], [0], [0], [1], [0, 0, 1, 1], [], []>} : vector<8x24xf32>, vector<24x256xf32>, vector<8x256xf32> -> vector<8x256xf32>
    %c0_5 = arith.constant 0 : index
    %c0_6 = arith.constant 0 : index
    %13 = vector.load %arg3[%c0_5, %c0_6] : memref<8x2xf32, #tpu.memory_space<vmem>>, vector<8x2xf32>
    %14 = vector.extract_strided_slice %13 {offsets = [0, 0], sizes = [8, 1], strides = [1, 1]} : vector<8x2xf32> to vector<8x1xf32>
    %15 = vector.extract_strided_slice %13 {offsets = [0, 1], sizes = [8, 1], strides = [1, 1]} : vector<8x2xf32> to vector<8x1xf32>
    %cst_7 = arith.constant dense<0.000000e+00> : vector<8xf32>
    %16 = vector.multi_reduction <add>, %12, %cst_7 [1] : vector<8x256xf32> to vector<8xf32>
    %17 = vector.shape_cast %16 : vector<8xf32> to vector<8x1xf32>
    %cst_8 = arith.constant 3.906250e-03 : f32
    %18 = vector.broadcast %cst_8 : f32 to vector<8x1xf32>
    %19 = arith.mulf %17, %18 : vector<8x1xf32>
    %20 = arith.mulf %12, %12 : vector<8x256xf32>
    %cst_9 = arith.constant dense<0.000000e+00> : vector<8xf32>
    %21 = vector.multi_reduction <add>, %20, %cst_9 [1] : vector<8x256xf32> to vector<8xf32>
    %22 = vector.shape_cast %21 : vector<8xf32> to vector<8x1xf32>
    %cst_10 = arith.constant 3.906250e-03 : f32
    %23 = vector.broadcast %cst_10 : f32 to vector<8x1xf32>
    %24 = arith.mulf %22, %23 : vector<8x1xf32>
    %25 = arith.mulf %19, %19 : vector<8x1xf32>
    %26 = arith.subf %24, %25 : vector<8x1xf32>
    %cst_11 = arith.constant 9.99999974E-6 : f32
    %27 = vector.broadcast %cst_11 : f32 to vector<8x1xf32>
    %28 = arith.addf %26, %27 : vector<8x1xf32>
    %29 = math.sqrt %28 : vector<8x1xf32>
    %30 = arith.divf %14, %29 : vector<8x1xf32>
    %31 = vector.broadcast %19 : vector<8x1xf32> to vector<8x256xf32>
    %32 = arith.subf %12, %31 : vector<8x256xf32>
    %33 = vector.broadcast %30 : vector<8x1xf32> to vector<8x256xf32>
    %34 = arith.mulf %32, %33 : vector<8x256xf32>
    %35 = vector.broadcast %15 : vector<8x1xf32> to vector<8x256xf32>
    %36 = arith.addf %34, %35 : vector<8x256xf32>
    %cst_12 = arith.constant 0.000000e+00 : f32
    %37 = vector.broadcast %cst_12 : f32 to vector<8x256xf32>
    %38 = arith.maximumf %36, %37 : vector<8x256xf32>
    %c1_i32_13 = arith.constant 1 : i32
    %39 = tpu.dynamic_rotate %38 by %c1_i32_13 dim 1 : vector<8x256xf32>, i32 -> vector<8x256xf32>
    %40 = vector.broadcast %1 : vector<1x256xf32> to vector<8x256xf32>
    %41 = arith.mulf %39, %40 : vector<8x256xf32>
    %c255_i32_14 = arith.constant 255 : i32
    %42 = tpu.dynamic_rotate %38 by %c255_i32_14 dim 1 : vector<8x256xf32>, i32 -> vector<8x256xf32>
    %43 = vector.broadcast %2 : vector<1x256xf32> to vector<8x256xf32>
    %44 = arith.mulf %42, %43 : vector<8x256xf32>
    %45 = tpu.concatenate %41, %38, %44 in 0 : vector<8x256xf32>, vector<8x256xf32>, vector<8x256xf32> -> vector<24x256xf32>
    %c0_15 = arith.constant 0 : index
    %c0_16 = arith.constant 0 : index
    %46 = vector.load %arg4[%c0_15, %c0_16] : memref<8x24xf32, #tpu.memory_space<vmem>>, vector<8x24xf32>
    %cst_17 = arith.constant dense<0.000000e+00> : vector<8x256xf32>
    %47 = tpu.matmul %46, %45, %cst_17 {dimension_numbers = #tpu.dot_dimension_numbers<[1], [0], [0], [1], [0, 0, 1, 1], [], []>} : vector<8x24xf32>, vector<24x256xf32>, vector<8x256xf32> -> vector<8x256xf32>
    %c0_18 = arith.constant 0 : index
    %c0_19 = arith.constant 0 : index
    %48 = vector.load %arg5[%c0_18, %c0_19] : memref<8x2xf32, #tpu.memory_space<vmem>>, vector<8x2xf32>
    %49 = vector.extract_strided_slice %48 {offsets = [0, 0], sizes = [8, 1], strides = [1, 1]} : vector<8x2xf32> to vector<8x1xf32>
    %50 = vector.extract_strided_slice %48 {offsets = [0, 1], sizes = [8, 1], strides = [1, 1]} : vector<8x2xf32> to vector<8x1xf32>
    %cst_20 = arith.constant dense<0.000000e+00> : vector<8xf32>
    %51 = vector.multi_reduction <add>, %47, %cst_20 [1] : vector<8x256xf32> to vector<8xf32>
    %52 = vector.shape_cast %51 : vector<8xf32> to vector<8x1xf32>
    %cst_21 = arith.constant 3.906250e-03 : f32
    %53 = vector.broadcast %cst_21 : f32 to vector<8x1xf32>
    %54 = arith.mulf %52, %53 : vector<8x1xf32>
    %55 = arith.mulf %47, %47 : vector<8x256xf32>
    %cst_22 = arith.constant dense<0.000000e+00> : vector<8xf32>
    %56 = vector.multi_reduction <add>, %55, %cst_22 [1] : vector<8x256xf32> to vector<8xf32>
    %57 = vector.shape_cast %56 : vector<8xf32> to vector<8x1xf32>
    %cst_23 = arith.constant 3.906250e-03 : f32
    %58 = vector.broadcast %cst_23 : f32 to vector<8x1xf32>
    %59 = arith.mulf %57, %58 : vector<8x1xf32>
    %60 = arith.mulf %54, %54 : vector<8x1xf32>
    %61 = arith.subf %59, %60 : vector<8x1xf32>
    %cst_24 = arith.constant 9.99999974E-6 : f32
    %62 = vector.broadcast %cst_24 : f32 to vector<8x1xf32>
    %63 = arith.addf %61, %62 : vector<8x1xf32>
    %64 = math.sqrt %63 : vector<8x1xf32>
    %65 = arith.divf %49, %64 : vector<8x1xf32>
    %66 = vector.broadcast %54 : vector<8x1xf32> to vector<8x256xf32>
    %67 = arith.subf %47, %66 : vector<8x256xf32>
    %68 = vector.broadcast %65 : vector<8x1xf32> to vector<8x256xf32>
    %69 = arith.mulf %67, %68 : vector<8x256xf32>
    %70 = vector.broadcast %50 : vector<8x1xf32> to vector<8x256xf32>
    %71 = arith.addf %69, %70 : vector<8x256xf32>
    %cst_25 = arith.constant 0.000000e+00 : f32
    %72 = vector.broadcast %cst_25 : f32 to vector<8x256xf32>
    %73 = arith.maximumf %71, %72 : vector<8x256xf32>
    %c0_26 = arith.constant 0 : index
    %c0_27 = arith.constant 0 : index
    %74 = vector.load %arg6[%c0_26, %c0_27] : memref<8x256xf32, #tpu.memory_space<vmem>>, vector<8x256xf32>
    tpu.vector_store %arg6[%c0_26, %c0_27], %73 {strides = array<i32>} : memref<8x256xf32, #tpu.memory_space<vmem>>, vector<8x256xf32>,
    return
  }
}

</mosaic_0001>

<llo_original>
// kernel: double_conv.1
$region0: #{double_conv.1}
  #allocation0 [shape = 'u32[]', space=smem, size = 0x4, offset = 0x4, fixed_abs, tag = 'smem constant byte address 0x4 - core index']
  #allocation1 [shape = 'u32[144,128]{1,0:T(1,128)}', space=vmem, size = 0x12000, scoped, tag = 'internal scratch']
  %s0 = inlined_call_operand.vmem [shape: f32[8,256], index: 0, kind: input, shape index: {}]
  %s1 = inlined_call_operand.vmem [shape: f32[2,256], index: 1, kind: input, shape index: {}]
  %s2 = inlined_call_operand.vmem [shape: f32[8,24], index: 2, kind: input, shape index: {}]
  %s3 = inlined_call_operand.vmem [shape: f32[8,2], index: 3, kind: input, shape index: {}]
  %s4 = inlined_call_operand.vmem [shape: f32[8,24], index: 4, kind: input, shape index: {}]
  %s5 = inlined_call_operand.vmem [shape: f32[8,2], index: 5, kind: input, shape index: {}]
  %s6 = inlined_call_operand.hbm [shape: f32[8,256], index: 6, kind: output, shape index: {}]
  %s7 = sld [smem:[#allocation0]]
  $region34: #{double_conv.1} parent=0
    _
  %s9 = ssub.s32 1, %s7
  %s10 = scalar_select 0, %s9, %s7
  $region1: #{double_conv.1} parent=0
    #allocation2 [shape = 'u8[8192]{0}', space=vmem, size = 0x2000, scoped, tag = 'output window, operand 0, single buffered']
    #allocation3 [shape = 's32[1]{0}', space=sflag, size = 0x4, scoped, tag = 'scoped memory for double_conv.1']
    %11 = vsyncpa [#allocation3], 0
    // Predicated region
    $region2: #{double_conv.1} parent=1 // pred_check
      _
    $region3: #{double_conv.1} parent=1 // pred_check_branch
      %13 = sbr.rel (0) target = $region5
    $region4: #{double_conv.1} parent=1 // pred_region
      _
    $region5: #{double_conv.1} parent=1 // pred_fallthru
      _
    // Predicated region
    $region6: #{double_conv.1} parent=1 // pred_check
      _
    $region7: #{double_conv.1} parent=1 // pred_check_branch
      %15 = sbr.rel (0) target = $region9
    $region8: #{double_conv.1} parent=1 // pred_region
      _
    $region9: #{double_conv.1} parent=1 // pred_fallthru
      _
    // Predicated region
    $region10: #{double_conv.1} parent=1 // pred_check
      _
    $region11: #{double_conv.1} parent=1 // pred_check_branch
      %17 = sbr.rel (0) target = $region13
    $region12: #{double_conv.1} parent=1 // pred_region
      _
    $region13: #{double_conv.1} parent=1 // pred_fallthru
      _
    // Predicated region
    $region14: #{double_conv.1} parent=1 // pred_check
      _
    $region15: #{double_conv.1} parent=1 // pred_check_branch
      %19 = sbr.rel (0) target = $region17
    $region16: #{double_conv.1} parent=1 // pred_region
      _
    $region17: #{double_conv.1} parent=1 // pred_fallthru
      _
    // Predicated region
    $region18: #{double_conv.1} parent=1 // pred_check
      _
    $region19: #{double_conv.1} parent=1 // pred_check_branch
      %21 = sbr.rel (0) target = $region21
    $region20: #{double_conv.1} parent=1 // pred_region
      _
    $region21: #{double_conv.1} parent=1 // pred_fallthru
      _
    // Predicated region
    $region22: #{double_conv.1} parent=1 // pred_check
      _
    $region23: #{double_conv.1} parent=1 // pred_check_branch
      %23 = sbr.rel (0) target = $region25
    $region24: #{double_conv.1} parent=1 // pred_region
      _
    $region25: #{double_conv.1} parent=1 // pred_fallthru
      _
    %v24 = vld [vmem:[%s1] sm:$0xf]
    %v25 = vld [vmem:[%s0] sm:$0xff]
    %v26 = vld [vmem:[%s0 + $0x8] sm:$0xff]
    %27 = vrot.lane.b32.xlu0 %v25, 1
    %v28 = vpop.permute.xlu0 %27
    %29 = vrot.lane.b32.xlu0 %v26, 1
    %v30 = vpop.permute.xlu0 %29
    %v31 = vlaneseq
    %v32 = vand.u32 %v31, 127
    %vm33 = vcmp.lt.s32.totalorder %v32, 1
    %v34 = vsel %vm33, %v28, %v30
    %v35 = vsel %vm33, %v30, %v28
    %v37 = vlaneseq
    %v38 = vshrl.u32 %v37, 7
    %v39 = vsub.s32 0, %v38
    %v40 = vrot.slane %v24, %v39
    %v41 = vlaneseq
    %v42 = vshrl.u32 %v41, 7
    %v43 = vsub.s32 2, %v42
    %v44 = vrot.slane %v24, %v43
    %v47 = vlaneseq
    %v48 = vshrl.u32 %v47, 7
    %v49 = vsub.s32 0, %v48
    %v50 = vrot.slane %v40, %v49
    %v51 = vlaneseq
    %v52 = vshrl.u32 %v51, 7
    %v53 = vsub.s32 0, %v52
    %v54 = vrot.slane %v44, %v53
    %v55 = vmul.f32 %v35, %v50
    %v56 = vmul.f32 %v34, %v54
    %57 = vrot.lane.b32.xlu0 %v25, 127
    %v58 = vpop.permute.xlu0 %57
    %59 = vrot.lane.b32.xlu0 %v26, 127
    %v60 = vpop.permute.xlu0 %59
    %vm61 = vcmp.lt.s32.totalorder %v32, 127
    %v62 = vsel %vm61, %v58, %v60
    %v63 = vsel %vm61, %v60, %v58
    %v64 = vlaneseq
    %v65 = vshrl.u32 %v64, 7
    %v66 = vsub.s32 1, %v65
    %v67 = vrot.slane %v24, %v66
    %v68 = vlaneseq
    %v69 = vshrl.u32 %v68, 7
    %v70 = vsub.s32 3, %v69
    %v71 = vrot.slane %v24, %v70
    %v74 = vlaneseq
    %v75 = vshrl.u32 %v74, 7
    %v76 = vsub.s32 1, %v75
    %v77 = vrot.slane %v67, %v76
    %v78 = vlaneseq
    %v79 = vshrl.u32 %v78, 7
    %v80 = vsub.s32 1, %v79
    %v81 = vrot.slane %v71, %v80
    %v82 = vmul.f32 %v62, %v77
    %v83 = vmul.f32 %v63, %v81
    %v84 = vld [vmem:[%s2] sm:$0xff]
    %vm85 = vcmask 195584
    %v87 = vsel %vm85, %v84, 0
    %89 = vmatprep.subr.mxu0 0.0
    %90 = vmatpush1.msra.mxu0 0.0
    %91 = vmatprep.subr.mxu0 0.0
    %92 = vmatpush1.msra.mxu0 0.0
    %93 = vmatprep.subr.mxu0 0.0
    %94 = vmatpush1.msra.mxu0 0.0
    %95 = vmatprep.subr.mxu0 0.0
    %96 = vmatpush1.msra.mxu0 0.0
    %97 = vmatprep.subr.mxu0 0.0
    %98 = vmatpush1.msra.mxu0 0.0
    %99 = vmatprep.subr.mxu0 0.0
    %100 = vmatpush1.msra.mxu0 0.0
    %101 = vmatprep.subr.mxu0 0.0
    %102 = vmatpush1.msra.mxu0 0.0
    %103 = vmatprep.subr.mxu0 0.0
    %104 = vmatpush1.msra.mxu0 0.0
    %105 = vmatprep.subr.mxu0 0.0
    %106 = vmatpush1.msra.mxu0 0.0
    %107 = vmatprep.subr.mxu0 0.0
    %108 = vmatpush1.msra.mxu0 0.0
    %109 = vmatprep.subr.mxu0 0.0
    %110 = vmatpush1.msra.mxu0 0.0
    %111 = vmatprep.subr.mxu0 0.0
    %112 = vmatpush1.msra.mxu0 0.0
    %113 = vmatprep.subr.mxu0 0.0
    %114 = vmatpush1.msra.mxu0 0.0
    %115 = vmatprep.subr.mxu0 %v83
    %116 = vmatpush1.msra.mxu0 %v82
    %117 = vmatprep.subr.mxu0 %v26
    %118 = vmatpush1.msra.mxu0 %v25
    %119 = vmatprep.subr.mxu0 %v56
    %120 = vmatpush1.msra.mxu0 %v55
    %121 = vmatprep.subr.mxu0 0.0
    %122 = vmatpush2.msra.mxu0 0.0
    %123 = vmatprep.subr.mxu0 0.0
    %124 = vmatpush2.msra.mxu0 0.0
    %125 = vmatprep.subr.mxu0 0.0
    %126 = vmatpush2.msra.mxu0 0.0
    %127 = vmatprep.subr.mxu0 0.0
    %128 = vmatpush2.msra.mxu0 0.0
    %129 = vmatprep.subr.mxu0 0.0
    %130 = vmatpush2.msra.mxu0 0.0
    %131 = vmatprep.subr.mxu0 0.0
    %132 = vmatpush2.msra.mxu0 0.0
    %133 = vmatprep.subr.mxu0 0.0
    %134 = vmatpush2.msra.mxu0 0.0
    %135 = vmatprep.subr.mxu0 0.0
    %136 = vmatpush2.msra.mxu0 0.0
    %137 = vmatprep.subr.mxu0 0.0
    %138 = vmatpush2.msra.mxu0 0.0
    %139 = vmatprep.subr.mxu0 0.0
    %140 = vmatpush2.msra.mxu0 0.0
    %141 = vmatprep.subr.mxu0 0.0
    %142 = vmatpush2.msra.mxu0 0.0
    %143 = vmatprep.subr.mxu0 0.0
    %144 = vmatpush2.msra.mxu0 0.0
    %145 = vmatprep.subr.mxu0 0.0
    %146 = vmatpush2.msra.mxu0 0.0
    %147 = vmatprep.subr.mxu0 0.0
    %148 = vmatpush2.msra.mxu0 0.0
    %149 = vmatprep.subr.mxu0 0.0
    %150 = vmatpush2.msra.mxu0 0.0
    %151 = vmatprep.subr.mxu0 0.0
    %152 = vmatpush2.msra.mxu0 0.0
    %153 = vmatprep.mubr.f32.mxu0 0.0
    %154 = vmatmul.mubr.f32.gmra.mxu0 %v87
    %v155 = vpop.f32.mrf.mxu0
    %v156 = vadd.f32 0.0, %v155
    %v157 = vpop.f32.mrf.mxu0
    %v158 = vadd.f32 0.0, %v157
    %159 = vdwg.mxu0
    %v160 = vld [vmem:[%s3] sm:$0xff]
    %v161 = vadd.f32 %v156, %v158
    %162 = vadd.xlane.f32.xlu0 %v161
    %v163 = vpop.xlane.xlu0 %162
    %v164 = vmul.f32 %v163, 0.00390625
    %v165 = vmul.f32 %v156, %v156
    %v166 = vmul.f32 %v158, %v158
    %v167 = vadd.f32 %v165, %v166
    %168 = vadd.xlane.f32.xlu0 %v167
    %v169 = vpop.xlane.xlu0 %168
    %v170 = vmul.f32 %v169, 0.00390625
    %v171 = vmul.f32 %v164, %v164
    %v172 = vsub.f32 %v170, %v171
    %v173 = vadd.f32 %v172, 1e-05
    %v174 = vrsqrt.pop %v173
    %v175 = vmul.f32 %v173, %v174
    %vm176 = vcmp.eq.f32.partialorder %v173, inf
    %v177 = vsel %vm176, %v173, %v175
    %vm178 = vcmp.eq.f32.partialorder %v173, 0.0
    %v179 = vand.u32 %v173, 2147483648
    %v180 = vsel %vm178, %v179, %v177
    %v181 = vrcp.pop %v180
    %v182 = vmul.f32 %v160, %v181
    %v183 = vsub.f32 %v156, %v164
    %v184 = vsub.f32 %v158, %v164
    %186 = vset.pattern.permute.xlu0 0
    %187 = vperm.xlu0 %186, %v182
    %v188 = vpop.permute.xlu0 %187
    %v190 = vmul.f32 %v183, %v188
    %v191 = vmul.f32 %v184, %v188
    %193 = vset.pattern.permute.xlu0 1
    %194 = vperm.xlu0 %193, %v160
    %v195 = vpop.permute.xlu0 %194
    %v197 = vadd.f32 %v190, %v195
    %v198 = vadd.f32 %v191, %v195
    %v199 = vmax.f32 %v197, 0.0
    %v200 = vmax.f32 %v198, 0.0
    %201 = vrot.lane.b32.xlu0 %v199, 1
    %v202 = vpop.permute.xlu0 %201
    %203 = vrot.lane.b32.xlu0 %v200, 1
    %v204 = vpop.permute.xlu0 %203
    %v205 = vsel %vm33, %v202, %v204
    %v206 = vsel %vm33, %v204, %v202
    %v207 = vmul.f32 %v206, %v50
    %v208 = vmul.f32 %v205, %v54
    %209 = vrot.lane.b32.xlu0 %v199, 127
    %v210 = vpop.permute.xlu0 %209
    %211 = vrot.lane.b32.xlu0 %v200, 127
    %v212 = vpop.permute.xlu0 %211
    %v213 = vsel %vm61, %v210, %v212
    %v214 = vsel %vm61, %v212, %v210
    %v215 = vmul.f32 %v213, %v77
    %v216 = vmul.f32 %v214, %v81
    %v217 = vld [vmem:[%s4] sm:$0xff]
    %v219 = vsel %vm85, %v217, 0
    %221 = vmatprep.subr.mxu0 0.0
    %222 = vmatpush1.msra.mxu0 0.0
    %223 = vmatprep.subr.mxu0 0.0
    %224 = vmatpush1.msra.mxu0 0.0
    %225 = vmatprep.subr.mxu0 0.0
    %226 = vmatpush1.msra.mxu0 0.0
    %227 = vmatprep.subr.mxu0 0.0
    %228 = vmatpush1.msra.mxu0 0.0
    %229 = vmatprep.subr.mxu0 0.0
    %230 = vmatpush1.msra.mxu0 0.0
    %231 = vmatprep.subr.mxu0 0.0
    %232 = vmatpush1.msra.mxu0 0.0
    %233 = vmatprep.subr.mxu0 0.0
    %234 = vmatpush1.msra.mxu0 0.0
    %235 = vmatprep.subr.mxu0 0.0
    %236 = vmatpush1.msra.mxu0 0.0
    %237 = vmatprep.subr.mxu0 0.0
    %238 = vmatpush1.msra.mxu0 0.0
    %239 = vmatprep.subr.mxu0 0.0
    %240 = vmatpush1.msra.mxu0 0.0
    %241 = vmatprep.subr.mxu0 0.0
    %242 = vmatpush1.msra.mxu0 0.0
    %243 = vmatprep.subr.mxu0 0.0
    %244 = vmatpush1.msra.mxu0 0.0
    %245 = vmatprep.subr.mxu0 0.0
    %246 = vmatpush1.msra.mxu0 0.0
    %247 = vmatprep.subr.mxu0 %v216
    %248 = vmatpush1.msra.mxu0 %v215
    %249 = vmatprep.subr.mxu0 %v200
    %250 = vmatpush1.msra.mxu0 %v199
    %251 = vmatprep.subr.mxu0 %v208
    %252 = vmatpush1.msra.mxu0 %v207
    %253 = vmatprep.subr.mxu0 0.0
    %254 = vmatpush2.msra.mxu0 0.0
    %255 = vmatprep.subr.mxu0 0.0
    %256 = vmatpush2.msra.mxu0 0.0
    %257 = vmatprep.subr.mxu0 0.0
    %258 = vmatpush2.msra.mxu0 0.0
    %259 = vmatprep.subr.mxu0 0.0
    %260 = vmatpush2.msra.mxu0 0.0
    %261 = vmatprep.subr.mxu0 0.0
    %262 = vmatpush2.msra.mxu0 0.0
    %263 = vmatprep.subr.mxu0 0.0
    %264 = vmatpush2.msra.mxu0 0.0
    %265 = vmatprep.subr.mxu0 0.0
    %266 = vmatpush2.msra.mxu0 0.0
    %267 = vmatprep.subr.mxu0 0.0
    %268 = vmatpush2.msra.mxu0 0.0
    %269 = vmatprep.subr.mxu0 0.0
    %270 = vmatpush2.msra.mxu0 0.0
    %271 = vmatprep.subr.mxu0 0.0
    %272 = vmatpush2.msra.mxu0 0.0
    %273 = vmatprep.subr.mxu0 0.0
    %274 = vmatpush2.msra.mxu0 0.0
    %275 = vmatprep.subr.mxu0 0.0
    %276 = vmatpush2.msra.mxu0 0.0
    %277 = vmatprep.subr.mxu0 0.0
    %278 = vmatpush2.msra.mxu0 0.0
    %279 = vmatprep.subr.mxu0 0.0
    %280 = vmatpush2.msra.mxu0 0.0
    %281 = vmatprep.subr.mxu0 0.0
    %282 = vmatpush2.msra.mxu0 0.0
    %283 = vmatprep.subr.mxu0 0.0
    %284 = vmatpush2.msra.mxu0 0.0
    %285 = vmatprep.mubr.f32.mxu0 0.0
    %286 = vmatmul.mubr.f32.gmra.mxu0 %v219
    %v287 = vpop.f32.mrf.mxu0
    %v288 = vadd.f32 0.0, %v287
    %v289 = vpop.f32.mrf.mxu0
    %v290 = vadd.f32 0.0, %v289
    %291 = vdwg.mxu0
    %v292 = vld [vmem:[%s5] sm:$0xff]
    %v293 = vadd.f32 %v288, %v290
    %294 = vadd.xlane.f32.xlu0 %v293
    %v295 = vpop.xlane.xlu0 %294
    %v296 = vmul.f32 %v295, 0.00390625
    %v297 = vmul.f32 %v288, %v288
    %v298 = vmul.f32 %v290, %v290
    %v299 = vadd.f32 %v297, %v298
    %300 = vadd.xlane.f32.xlu0 %v299
    %v301 = vpop.xlane.xlu0 %300
    %v302 = vmul.f32 %v301, 0.00390625
    %v303 = vmul.f32 %v296, %v296
    %v304 = vsub.f32 %v302, %v303
    %v305 = vadd.f32 %v304, 1e-05
    %v306 = vrsqrt.pop %v305
    %v307 = vmul.f32 %v305, %v306
    %vm308 = vcmp.eq.f32.partialorder %v305, inf
    %v309 = vsel %vm308, %v305, %v307
    %vm310 = vcmp.eq.f32.partialorder %v305, 0.0
    %v311 = vand.u32 %v305, 2147483648
    %v312 = vsel %vm310, %v311, %v309
    %v313 = vrcp.pop %v312
    %v314 = vmul.f32 %v292, %v313
    %v315 = vsub.f32 %v288, %v296
    %v316 = vsub.f32 %v290, %v296
    %318 = vset.pattern.permute.xlu0 0
    %319 = vperm.xlu0 %318, %v314
    %v320 = vpop.permute.xlu0 %319
    %v322 = vmul.f32 %v315, %v320
    %v323 = vmul.f32 %v316, %v320
    %325 = vset.pattern.permute.xlu0 1
    %326 = vperm.xlu0 %325, %v292
    %v327 = vpop.permute.xlu0 %326
    %v329 = vadd.f32 %v322, %v327
    %v330 = vadd.f32 %v323, %v327
    %v331 = vmax.f32 %v329, 0.0
    %v332 = vmax.f32 %v330, 0.0
    %333 = vst [vmem:[#allocation2] sm:$0xff] %v331
    %334 = vst [vmem:[#allocation2 + $0x8] sm:$0xff] %v332
    // Predicated region
    $region26: #{double_conv.1} parent=1 // pred_check
      _
    $region27: #{double_conv.1} parent=1 // pred_check_branch
      %336 = sbr.rel (0) target = $region29
    $region28: #{double_conv.1} parent=1 // pred_region
      %s338 = ssub.s32 256, 256
      %339 = vsyncadd [#allocation3], %s338
      %s341 = sshll.u32 [#allocation2], 4
      %s342 = int_to_ptr.vmem [resolvable:$true] %s341
      %344 = dma.vmem_to_hbm [thread:$0]  %s342, 256, %s6, [#allocation3]
    $region29: #{double_conv.1} parent=1 // pred_fallthru
      _
    // Predicated region
    $region30: #{double_conv.1} parent=1 // pred_check
      _
    $region31: #{double_conv.1} parent=1 // pred_check_branch
      %346 = sbr.rel (0) target = $region33
    $region32: #{double_conv.1} parent=1 // pred_region
      %347 = dma.done [#allocation3], 256
    $region33: #{double_conv.1} parent=1 // pred_fallthru
      _
    %348 = vsyncpa [#allocation3], 1

</llo_original>
